<compile_context>
chip_gen: v7x
topology: tpu7x:2x2x1
jax: 0.10.0
libtpu: 0.0.40
codegen_flags: <defaults>
</compile_context>

<pallas_src>
import jax
import jax.numpy as jnp
import numpy as np
from jax.experimental import pallas as pl
from jax.experimental.pallas import tpu as pltpu


_VMEM_LIMIT = 48 * 1024 * 1024  # headroom below v7x's 64 MiB physical VMEM


def _pick_row_tile(m):
    """Row tile for the dense kernel: big lane-dense tiles at real sizes,
    single block at toy sizes."""
    for t in (512, 256, 128):
        if m % t == 0:
            return t
    return m


# ----------------------------------------------------------------------------
# Dense kernel: y = act(x @ w + b), tiled over rows, bf16 MXU / f32 accumulate.
# Used for the attention projection (mem @ W_a^T) and the output projection
# (concat([ctx, h]) @ W_c + b_c) as one big lane-dense matmul each.
# ----------------------------------------------------------------------------
def _make_dense_kernel(activation):
    def kernel(x_ref, w_ref, b_ref, y_ref):
        acc = jnp.dot(
            x_ref[...].astype(jnp.bfloat16),
            w_ref[...].astype(jnp.bfloat16),
            preferred_element_type=jnp.float32,
        ) + b_ref[...]
        if activation == "tanh":
            acc = jnp.tanh(acc)
        y_ref[...] = acc.astype(y_ref.dtype)
    return kernel


def dense(x, w, b, activation=None, out_dtype=jnp.float32):
    M, K = x.shape
    N = w.shape[1]
    tm = _pick_row_tile(M)
    return pl.pallas_call(
        _make_dense_kernel(activation),
        out_shape=jax.ShapeDtypeStruct((M, N), out_dtype),
        grid_spec=pltpu.PrefetchScalarGridSpec(
            num_scalar_prefetch=0,
            grid=(M // tm,),
            in_specs=[
                pl.BlockSpec((tm, K), lambda i: (i, 0)),
                pl.BlockSpec((K, N), lambda i: (0, 0)),
                pl.BlockSpec((1, N), lambda i: (0, 0)),
            ],
            out_specs=pl.BlockSpec((tm, N), lambda i: (i, 0)),
        ),
        compiler_params=pltpu.CompilerParams(
            dimension_semantics=("parallel",),
            vmem_limit_bytes=_VMEM_LIMIT,
        ),
    )(x, w, b)


# ----------------------------------------------------------------------------
# Recurrence kernel (shared by encoder and decoder): the ONLY serial work.
#   h_t = tanh(xp_t + h_{t-1} @ W_hh)     (bf16 MXU matmul, f32 accumulate)
# Outputs all hidden states (L, B, H) and the final state (B, H).
# Grid is batch-sharded ("parallel") when B allows, for v7x's two TensorCores.
# ----------------------------------------------------------------------------
def _rnn_kernel(xp_ref, h0_ref, whh_ref, hall_ref, hfin_ref):
    L = xp_ref.shape[0]
    whh = whh_ref[...].astype(jnp.bfloat16)

    def body(t, h):
        h_new = jnp.tanh(
            xp_ref[t]
            + jnp.dot(h.astype(jnp.bfloat16), whh,
                      preferred_element_type=jnp.float32)
        )
        hall_ref[t] = h_new.astype(hall_ref.dtype)
        return h_new

    h_fin = jax.lax.fori_loop(
        0, L, body, h0_ref[...].astype(jnp.float32), unroll=min(8, L)
    )
    hfin_ref[...] = h_fin.astype(hfin_ref.dtype)


def rnn_forward(xp, h0, w_hh):
    L, B, H = xp.shape
    n_shards = 2 if B % 16 == 0 else 1   # batch split across TCs (v7x) if legal
    bs = B // n_shards
    return pl.pallas_call(
        _rnn_kernel,
        out_shape=(
            jax.ShapeDtypeStruct((L, B, H), jnp.float32),
            jax.ShapeDtypeStruct((B, H), jnp.float32),
        ),
        grid_spec=pltpu.PrefetchScalarGridSpec(
            num_scalar_prefetch=0,
            grid=(n_shards,),
            in_specs=[
                pl.BlockSpec((L, bs, H), lambda g: (0, g, 0)),
                pl.BlockSpec((bs, H), lambda g: (g, 0)),
                pl.BlockSpec((H, H), lambda g: (0, 0)),
            ],
            out_specs=[
                pl.BlockSpec((L, bs, H), lambda g: (0, g, 0)),
                pl.BlockSpec((bs, H), lambda g: (g, 0)),
            ],
        ),
        compiler_params=pltpu.CompilerParams(
            dimension_semantics=("parallel",),
            vmem_limit_bytes=_VMEM_LIMIT,
        ),
    )(xp, h0, w_hh)


# ----------------------------------------------------------------------------
# Batched Luong "general" attention (hoisted out of the time loop):
#   scores = einsum('bth,bsh->bts', h, mem @ W_a^T) + mask
#   align  = softmax(scores)            (exact division; max-subtracted)
#   ctx    = einsum('bts,bsh->bth', align, mem)
# One grid step per batch tile, "parallel" for megacore.
# ----------------------------------------------------------------------------
def _attn_kernel(h_ref, mem_ref, mp_ref, mask_ref, ctx_ref, attn_ref):
    h = h_ref[...]            # (bs, T, H) bf16
    mp = mp_ref[...]          # (bs, S, H) bf16
    mem = mem_ref[...]        # (bs, S, H) bf16

    scores = jnp.einsum('bth,bsh->bts', h, mp,
                        preferred_element_type=jnp.float32)
    scores = scores + mask_ref[...]                      # (bs,1,S) broadcast
    scores = scores - jnp.max(scores, axis=-1, keepdims=True)
    e = jnp.exp(scores)
    align = e / jnp.sum(e, axis=-1, keepdims=True)       # exact softmax

    ctx = jnp.einsum('bts,bsh->bth', align.astype(mem.dtype), mem,
                     preferred_element_type=jnp.float32)
    ctx_ref[...] = ctx.astype(ctx_ref.dtype)
    attn_ref[...] = align.astype(attn_ref.dtype)


def luong_attention(h_bth, mem_bsh, mp_bsh, mask_b1s):
    B, T, H = h_bth.shape
    S = mem_bsh.shape[1]
    bs = max(d for d in (8, 4, 2, 1) if B % d == 0)
    return pl.pallas_call(
        _attn_kernel,
        out_shape=(
            jax.ShapeDtypeStruct((B, T, H), jnp.float32),
            jax.ShapeDtypeStruct((B, T, S), jnp.float32),
        ),
        grid_spec=pltpu.PrefetchScalarGridSpec(
            num_scalar_prefetch=0,
            grid=(B // bs,),
            in_specs=[
                pl.BlockSpec((bs, T, H), lambda b: (b, 0, 0)),
                pl.BlockSpec((bs, S, H), lambda b: (b, 0, 0)),
                pl.BlockSpec((bs, S, H), lambda b: (b, 0, 0)),
                pl.BlockSpec((bs, 1, S), lambda b: (b, 0, 0)),
            ],
            out_specs=[
                pl.BlockSpec((bs, T, H), lambda b: (b, 0, 0)),
                pl.BlockSpec((bs, T, S), lambda b: (b, 0, 0)),
            ],
        ),
        compiler_params=pltpu.CompilerParams(
            dimension_semantics=("parallel",),
            vmem_limit_bytes=_VMEM_LIMIT,
        ),
    )(h_bth, mem_bsh, mp_bsh, mask_b1s)


# ----------------------------------------------------------------------------
# NMTModel forward (encoder + decoder composition, matching the PyTorch module)
# ----------------------------------------------------------------------------
class NMTModelPallas:
    def __init__(self, params):
        self.p = params
        # Fold the non-recurrent input projections into the embedding tables
        # (one-time (V,E)@(E,H) precompute instead of per-call dense matmuls).
        self.src_proj_table = (
            params["src_embed"] @ params["enc_w_ih"] + params["enc_b"]
        ).astype(jnp.float32)
        self.tgt_proj_table = (
            params["tgt_embed"] @ params["dec_w_ih"] + params["dec_b"]
        ).astype(jnp.float32)
        # bf16 copies of all matmul weights (MXU full-rate, half the DMA).
        self.enc_w_hh = params["enc_w_hh"].astype(jnp.bfloat16)
        self.dec_w_hh = params["dec_w_hh"].astype(jnp.bfloat16)
        self.attn_w_t = jnp.transpose(params["attn_w"]).astype(jnp.bfloat16)
        self.out_w = params["out_w"].astype(jnp.bfloat16)
        self.out_b = params["out_b"].astype(jnp.float32)
        self.hidden = params["enc_w_hh"].shape[0]
        self._state = {}

    def init_state(self, src, memory_bank, enc_state):
        # Mirrors decoder.init_state: stash encoder final hidden + memory bank.
        self._state = {"hidden": enc_state, "memory_bank": memory_bank}

    def __call__(self, src, tgt, lengths, bptt=False, with_align=False):
        H = self.hidden
        dec_in = tgt[:-1]                                 # (tgt_len-1, B)
        S, B = src.shape

        # --- encoder: serial recurrence only ---
        enc_xp = jnp.take(self.src_proj_table, src, axis=0)      # (S, B, H)
        h0 = jnp.zeros((B, H), jnp.float32)
        memory_bank, enc_state = rnn_forward(enc_xp, h0, self.enc_w_hh)

        if bptt is False:
            self.init_state(src, memory_bank, enc_state)

        # --- decoder: serial recurrence only (attention fully hoisted) ---
        dec_xp = jnp.take(self.tgt_proj_table, dec_in, axis=0)   # (T, B, H)
        T = dec_xp.shape[0]
        dec_hall, _ = rnn_forward(dec_xp, self._state["hidden"], self.dec_w_hh)

        # Layout plumbing (XLA, one-shot): (S,B,H)/(T,B,H) -> (B,S,H)/(B,T,H).
        mem = self._state["memory_bank"]                          # (S, B, H)
        mem_bsh = jnp.transpose(mem, (1, 0, 2)).astype(jnp.bfloat16)
        h_bth_f32 = jnp.transpose(dec_hall, (1, 0, 2))
        h_bth = h_bth_f32.astype(jnp.bfloat16)

        # Hoisted attention projection: one (B*S, H) @ (H, H) MXU matmul.
        mp_bsh = dense(
            mem_bsh.reshape(B * S, H), self.attn_w_t,
            jnp.zeros((1, H), jnp.float32), out_dtype=jnp.bfloat16,
        ).reshape(B, S, H)

        mask = jnp.where(
            jnp.arange(S)[None, :] < lengths[:, None], 0.0, -1e9
        ).astype(jnp.float32).reshape(B, 1, S)

        # Batched attention over all T steps at once.
        ctx_bth, attn_bts = luong_attention(h_bth, mem_bsh, mp_bsh, mask)

        # Output projection: one lane-dense (B*T, 2H) @ (2H, H) matmul + tanh.
        cat = jnp.concatenate([ctx_bth, h_bth_f32], axis=-1).reshape(B * T, 2 * H)
        out = dense(cat, self.out_w, self.out_b, activation="tanh")

        dec_out = jnp.transpose(out.reshape(B, T, H), (1, 0, 2))   # (T, B, H)
        attns = {"std": jnp.transpose(attn_bts, (1, 0, 2))}        # (T, B, S)
        # TODO(synk): with_align ("align" attention head) only exists for transformer
        # decoders in OpenNMT; not applicable to this RNN decoder instantiation.
        return dec_out, attns


# ----------------------------------------------------------------------------
# Pure-JAX f32 reference (for a sanity check of the Pallas kernels)
# ----------------------------------------------------------------------------
def reference_forward(p, src, tgt, lengths):
    src_emb = jnp.take(p["src_embed"], src, axis=0)
    S, B, E = src_emb.shape
    H = p["enc_w_hh"].shape[0]
    h = jnp.zeros((B, H), jnp.float32)
    mem = []
    for t in range(S):
        h = jnp.tanh(src_emb[t] @ p["enc_w_ih"] + h @ p["enc_w_hh"] + p["enc_b"])
        mem.append(h)
    mem = jnp.stack(mem, axis=0)                                 # (S, B, H)
    enc_state = h

    dec_in = tgt[:-1]
    dec_emb = jnp.take(p["tgt_embed"], dec_in, axis=0)
    mask_bias = jnp.where(jnp.arange(S)[None, :] < lengths[:, None], 0.0, -1e9)
    mem_bsh = jnp.transpose(mem, (1, 0, 2))

    hd = enc_state
    outs, attns = [], []
    for t in range(dec_emb.shape[0]):
        hd = jnp.tanh(dec_emb[t] @ p["dec_w_ih"] + hd @ p["dec_w_hh"] + p["dec_b"])
        q = hd @ p["attn_w"]
        scores = jnp.sum(q[:, None, :] * mem_bsh, axis=-1) + mask_bias
        align = jax.nn.softmax(scores, axis=-1)
        ctx = jnp.sum(align[:, :, None] * mem_bsh, axis=1)
        out = jnp.tanh(jnp.concatenate([ctx, hd], -1) @ p["out_w"] + p["out_b"])
        outs.append(out)
        attns.append(align)
    return jnp.stack(outs, 0), jnp.stack(attns, 0)


# ----------------------------------------------------------------------------
# main
# ----------------------------------------------------------------------------
if __name__ == "__main__":
    SRC_LEN, TGT_LEN, BATCH = 8, 9, 2
    EMB, HID = 32, 32
    SRC_VOCAB, TGT_VOCAB = 16, 16

    key = jax.random.PRNGKey(0)
    ks = jax.random.split(key, 12)

    def init(k, shape, scale=0.1):
        return (scale * jax.random.normal(k, shape)).astype(jnp.float32)

    params = {
        "src_embed": init(ks[0], (SRC_VOCAB, EMB)),
        "tgt_embed": init(ks[1], (TGT_VOCAB, EMB)),
        "enc_w_ih": init(ks[2], (EMB, HID)),
        "enc_w_hh": init(ks[3], (HID, HID)),
        "enc_b": init(ks[4], (1, HID)),
        "dec_w_ih": init(ks[5], (EMB, HID)),
        "dec_w_hh": init(ks[6], (HID, HID)),
        "dec_b": init(ks[7], (1, HID)),
        "attn_w": init(ks[8], (HID, HID)),
        "out_w": init(ks[9], (2 * HID, HID)),
        "out_b": init(ks[10], (1, HID)),
    }

    src = jax.random.randint(ks[11], (SRC_LEN, BATCH), 0, SRC_VOCAB, dtype=jnp.int32)
    tgt = jax.random.randint(ks[0], (TGT_LEN, BATCH), 0, TGT_VOCAB, dtype=jnp.int32)
    lengths = jnp.array([SRC_LEN, SRC_LEN - 3], dtype=jnp.int32)

    model = NMTModelPallas(params)
    dec_out, attns = model(src, tgt, lengths)
    dec_out = jax.block_until_ready(dec_out)
    attn_std = jax.block_until_ready(attns["std"])

    assert dec_out.shape == (TGT_LEN - 1, BATCH, HID)
    assert attn_std.shape == (TGT_LEN - 1, BATCH, SRC_LEN)

    ref_out, ref_attn = reference_forward(params, src, tgt, lengths)
    # Tolerance covers bf16 MXU operands (f32 accumulation, f32 reference).
    np.testing.assert_allclose(np.asarray(dec_out), np.asarray(ref_out),
                               rtol=2e-2, atol=2e-2)
    np.testing.assert_allclose(np.asarray(attn_std), np.asarray(ref_attn),
                               rtol=2e-2, atol=2e-2)

    print("KERNEL_OK")
</pallas_src>

<mosaic_0001>
module attributes {stable_mosaic.version = 11 : i64} {
  func.func @_rnn_kernel(%arg0: i32, %arg1: memref<8x2x32xf32, #tpu.memory_space<vmem>>, %arg2: memref<2x32xf32, #tpu.memory_space<vmem>>, %arg3: memref<32x32xbf16, #tpu.memory_space<vmem>>, %arg4: memref<8x2x32xf32, #tpu.memory_space<vmem>>, %arg5: memref<2x32xf32, #tpu.memory_space<vmem>>) attributes {dimension_semantics = [#tpu.dimension_semantics<parallel>], iteration_bounds = array<i64: 1>, scalar_prefetch = 0 : i64, scratch_operands = 0 : i64, tpu.core_type = #tpu.core_type<tc>, window_params = [{transform_indices = @transform_0, window_bounds = array<i64: 8, 2, 32>}, {transform_indices = @transform_1, window_bounds = array<i64: 2, 32>}, {pipeline_mode = #tpu.pipeline_mode<synchronous>, transform_indices = @transform_2, window_bounds = array<i64: 32, 32>}, {transform_indices = @transform_3, window_bounds = array<i64: 8, 2, 32>}, {transform_indices = @transform_4, window_bounds = array<i64: 2, 32>}]} {
    %c0 = arith.constant 0 : index
    %c0_0 = arith.constant 0 : index
    %0 = vector.load %arg3[%c0, %c0_0] : memref<32x32xbf16, #tpu.memory_space<vmem>>, vector<32x32xbf16>
    %c0_1 = arith.constant 0 : index
    %c0_2 = arith.constant 0 : index
    %1 = vector.load %arg2[%c0_1, %c0_2] : memref<2x32xf32, #tpu.memory_space<vmem>>, vector<2x32xf32>
    %c0_i32 = arith.constant 0 : i32
    %2 = arith.index_cast %c0_i32 : i32 to index
    %c0_3 = arith.constant 0 : index
    %c0_4 = arith.constant 0 : index
    %3 = vector.load %arg1[%2, %c0_3, %c0_4] : memref<8x2x32xf32, #tpu.memory_space<vmem>>, vector<1x2x32xf32>
    %4 = vector.shape_cast %3 : vector<1x2x32xf32> to vector<2x32xf32>
    %5 = arith.truncf %1 : vector<2x32xf32> to vector<2x32xbf16>
    %cst = arith.constant dense<0.000000e+00> : vector<2x32xf32>
    %6 = tpu.matmul %5, %0, %cst {dimension_numbers = #tpu.dot_dimension_numbers<[1], [0], [0], [1], [0, 0, 1, 1], [], []>} : vector<2x32xbf16>, vector<32x32xbf16>, vector<2x32xf32> -> vector<2x32xf32>
    %7 = arith.addf %4, %6 : vector<2x32xf32>
    %8 = math.tanh %7 : vector<2x32xf32>
    %9 = arith.index_cast %c0_i32 : i32 to index
    %c0_5 = arith.constant 0 : index
    %c0_6 = arith.constant 0 : index
    %10 = vector.load %arg4[%9, %c0_5, %c0_6] : memref<8x2x32xf32, #tpu.memory_space<vmem>>, vector<1x2x32xf32>
    %11 = vector.shape_cast %10 : vector<1x2x32xf32> to vector<2x32xf32>
    %12 = vector.shape_cast %8 : vector<2x32xf32> to vector<1x2x32xf32>
    tpu.vector_store %arg4[%9, %c0_5, %c0_6], %12 {strides = array<i32>} : memref<8x2x32xf32, #tpu.memory_space<vmem>>, vector<1x2x32xf32>,
    %c1_i32 = arith.constant 1 : i32
    %13 = arith.index_cast %c1_i32 : i32 to index
    %c0_7 = arith.constant 0 : index
    %c0_8 = arith.constant 0 : index
    %14 = vector.load %arg1[%13, %c0_7, %c0_8] : memref<8x2x32xf32, #tpu.memory_space<vmem>>, vector<1x2x32xf32>
    %15 = vector.shape_cast %14 : vector<1x2x32xf32> to vector<2x32xf32>
    %16 = arith.truncf %8 : vector<2x32xf32> to vector<2x32xbf16>
    %cst_9 = arith.constant dense<0.000000e+00> : vector<2x32xf32>
    %17 = tpu.matmul %16, %0, %cst_9 {dimension_numbers = #tpu.dot_dimension_numbers<[1], [0], [0], [1], [0, 0, 1, 1], [], []>} : vector<2x32xbf16>, vector<32x32xbf16>, vector<2x32xf32> -> vector<2x32xf32>
    %18 = arith.addf %15, %17 : vector<2x32xf32>
    %19 = math.tanh %18 : vector<2x32xf32>
    %20 = arith.index_cast %c1_i32 : i32 to index
    %c0_10 = arith.constant 0 : index
    %c0_11 = arith.constant 0 : index
    %21 = vector.load %arg4[%20, %c0_10, %c0_11] : memref<8x2x32xf32, #tpu.memory_space<vmem>>, vector<1x2x32xf32>
    %22 = vector.shape_cast %21 : vector<1x2x32xf32> to vector<2x32xf32>
    %23 = vector.shape_cast %19 : vector<2x32xf32> to vector<1x2x32xf32>
    tpu.vector_store %arg4[%20, %c0_10, %c0_11], %23 {strides = array<i32>} : memref<8x2x32xf32, #tpu.memory_space<vmem>>, vector<1x2x32xf32>,
    %c2_i32 = arith.constant 2 : i32
    %24 = arith.index_cast %c2_i32 : i32 to index
    %c0_12 = arith.constant 0 : index
    %c0_13 = arith.constant 0 : index
    %25 = vector.load %arg1[%24, %c0_12, %c0_13] : memref<8x2x32xf32, #tpu.memory_space<vmem>>, vector<1x2x32xf32>
    %26 = vector.shape_cast %25 : vector<1x2x32xf32> to vector<2x32xf32>
    %27 = arith.truncf %19 : vector<2x32xf32> to vector<2x32xbf16>
    %cst_14 = arith.constant dense<0.000000e+00> : vector<2x32xf32>
    %28 = tpu.matmul %27, %0, %cst_14 {dimension_numbers = #tpu.dot_dimension_numbers<[1], [0], [0], [1], [0, 0, 1, 1], [], []>} : vector<2x32xbf16>, vector<32x32xbf16>, vector<2x32xf32> -> vector<2x32xf32>
    %29 = arith.addf %26, %28 : vector<2x32xf32>
    %30 = math.tanh %29 : vector<2x32xf32>
    %31 = arith.index_cast %c2_i32 : i32 to index
    %c0_15 = arith.constant 0 : index
    %c0_16 = arith.constant 0 : index
    %32 = vector.load %arg4[%31, %c0_15, %c0_16] : memref<8x2x32xf32, #tpu.memory_space<vmem>>, vector<1x2x32xf32>
    %33 = vector.shape_cast %32 : vector<1x2x32xf32> to vector<2x32xf32>
    %34 = vector.shape_cast %30 : vector<2x32xf32> to vector<1x2x32xf32>
    tpu.vector_store %arg4[%31, %c0_15, %c0_16], %34 {strides = array<i32>} : memref<8x2x32xf32, #tpu.memory_space<vmem>>, vector<1x2x32xf32>,
    %c3_i32 = arith.constant 3 : i32
    %35 = arith.index_cast %c3_i32 : i32 to index
    %c0_17 = arith.constant 0 : index
    %c0_18 = arith.constant 0 : index
    %36 = vector.load %arg1[%35, %c0_17, %c0_18] : memref<8x2x32xf32, #tpu.memory_space<vmem>>, vector<1x2x32xf32>
    %37 = vector.shape_cast %36 : vector<1x2x32xf32> to vector<2x32xf32>
    %38 = arith.truncf %30 : vector<2x32xf32> to vector<2x32xbf16>
    %cst_19 = arith.constant dense<0.000000e+00> : vector<2x32xf32>
    %39 = tpu.matmul %38, %0, %cst_19 {dimension_numbers = #tpu.dot_dimension_numbers<[1], [0], [0], [1], [0, 0, 1, 1], [], []>} : vector<2x32xbf16>, vector<32x32xbf16>, vector<2x32xf32> -> vector<2x32xf32>
    %40 = arith.addf %37, %39 : vector<2x32xf32>
    %41 = math.tanh %40 : vector<2x32xf32>
    %42 = arith.index_cast %c3_i32 : i32 to index
    %c0_20 = arith.constant 0 : index
    %c0_21 = arith.constant 0 : index
    %43 = vector.load %arg4[%42, %c0_20, %c0_21] : memref<8x2x32xf32, #tpu.memory_space<vmem>>, vector<1x2x32xf32>
    %44 = vector.shape_cast %43 : vector<1x2x32xf32> to vector<2x32xf32>
    %45 = vector.shape_cast %41 : vector<2x32xf32> to vector<1x2x32xf32>
    tpu.vector_store %arg4[%42, %c0_20, %c0_21], %45 {strides = array<i32>} : memref<8x2x32xf32, #tpu.memory_space<vmem>>, vector<1x2x32xf32>,
    %c4_i32 = arith.constant 4 : i32
    %46 = arith.index_cast %c4_i32 : i32 to index
    %c0_22 = arith.constant 0 : index
    %c0_23 = arith.constant 0 : index
    %47 = vector.load %arg1[%46, %c0_22, %c0_23] : memref<8x2x32xf32, #tpu.memory_space<vmem>>, vector<1x2x32xf32>
    %48 = vector.shape_cast %47 : vector<1x2x32xf32> to vector<2x32xf32>
    %49 = arith.truncf %41 : vector<2x32xf32> to vector<2x32xbf16>
    %cst_24 = arith.constant dense<0.000000e+00> : vector<2x32xf32>
    %50 = tpu.matmul %49, %0, %cst_24 {dimension_numbers = #tpu.dot_dimension_numbers<[1], [0], [0], [1], [0, 0, 1, 1], [], []>} : vector<2x32xbf16>, vector<32x32xbf16>, vector<2x32xf32> -> vector<2x32xf32>
    %51 = arith.addf %48, %50 : vector<2x32xf32>
    %52 = math.tanh %51 : vector<2x32xf32>
    %53 = arith.index_cast %c4_i32 : i32 to index
    %c0_25 = arith.constant 0 : index
    %c0_26 = arith.constant 0 : index
    %54 = vector.load %arg4[%53, %c0_25, %c0_26] : memref<8x2x32xf32, #tpu.memory_space<vmem>>, vector<1x2x32xf32>
    %55 = vector.shape_cast %54 : vector<1x2x32xf32> to vector<2x32xf32>
    %56 = vector.shape_cast %52 : vector<2x32xf32> to vector<1x2x32xf32>
    tpu.vector_store %arg4[%53, %c0_25, %c0_26], %56 {strides = array<i32>} : memref<8x2x32xf32, #tpu.memory_space<vmem>>, vector<1x2x32xf32>,
    %c5_i32 = arith.constant 5 : i32
    %57 = arith.index_cast %c5_i32 : i32 to index
    %c0_27 = arith.constant 0 : index
    %c0_28 = arith.constant 0 : index
    %58 = vector.load %arg1[%57, %c0_27, %c0_28] : memref<8x2x32xf32, #tpu.memory_space<vmem>>, vector<1x2x32xf32>
    %59 = vector.shape_cast %58 : vector<1x2x32xf32> to vector<2x32xf32>
    %60 = arith.truncf %52 : vector<2x32xf32> to vector<2x32xbf16>
    %cst_29 = arith.constant dense<0.000000e+00> : vector<2x32xf32>
    %61 = tpu.matmul %60, %0, %cst_29 {dimension_numbers = #tpu.dot_dimension_numbers<[1], [0], [0], [1], [0, 0, 1, 1], [], []>} : vector<2x32xbf16>, vector<32x32xbf16>, vector<2x32xf32> -> vector<2x32xf32>
    %62 = arith.addf %59, %61 : vector<2x32xf32>
    %63 = math.tanh %62 : vector<2x32xf32>
    %64 = arith.index_cast %c5_i32 : i32 to index
    %c0_30 = arith.constant 0 : index
    %c0_31 = arith.constant 0 : index
    %65 = vector.load %arg4[%64, %c0_30, %c0_31] : memref<8x2x32xf32, #tpu.memory_space<vmem>>, vector<1x2x32xf32>
    %66 = vector.shape_cast %65 : vector<1x2x32xf32> to vector<2x32xf32>
    %67 = vector.shape_cast %63 : vector<2x32xf32> to vector<1x2x32xf32>
    tpu.vector_store %arg4[%64, %c0_30, %c0_31], %67 {strides = array<i32>} : memref<8x2x32xf32, #tpu.memory_space<vmem>>, vector<1x2x32xf32>,
    %c6_i32 = arith.constant 6 : i32
    %68 = arith.index_cast %c6_i32 : i32 to index
    %c0_32 = arith.constant 0 : index
    %c0_33 = arith.constant 0 : index
    %69 = vector.load %arg1[%68, %c0_32, %c0_33] : memref<8x2x32xf32, #tpu.memory_space<vmem>>, vector<1x2x32xf32>
    %70 = vector.shape_cast %69 : vector<1x2x32xf32> to vector<2x32xf32>
    %71 = arith.truncf %63 : vector<2x32xf32> to vector<2x32xbf16>
    %cst_34 = arith.constant dense<0.000000e+00> : vector<2x32xf32>
    %72 = tpu.matmul %71, %0, %cst_34 {dimension_numbers = #tpu.dot_dimension_numbers<[1], [0], [0], [1], [0, 0, 1, 1], [], []>} : vector<2x32xbf16>, vector<32x32xbf16>, vector<2x32xf32> -> vector<2x32xf32>
    %73 = arith.addf %70, %72 : vector<2x32xf32>
    %74 = math.tanh %73 : vector<2x32xf32>
    %75 = arith.index_cast %c6_i32 : i32 to index
    %c0_35 = arith.constant 0 : index
    %c0_36 = arith.constant 0 : index
    %76 = vector.load %arg4[%75, %c0_35, %c0_36] : memref<8x2x32xf32, #tpu.memory_space<vmem>>, vector<1x2x32xf32>
    %77 = vector.shape_cast %76 : vector<1x2x32xf32> to vector<2x32xf32>
    %78 = vector.shape_cast %74 : vector<2x32xf32> to vector<1x2x32xf32>
    tpu.vector_store %arg4[%75, %c0_35, %c0_36], %78 {strides = array<i32>} : memref<8x2x32xf32, #tpu.memory_space<vmem>>, vector<1x2x32xf32>,
    %c7_i32 = arith.constant 7 : i32
    %79 = arith.index_cast %c7_i32 : i32 to index
    %c0_37 = arith.constant 0 : index
    %c0_38 = arith.constant 0 : index
    %80 = vector.load %arg1[%79, %c0_37, %c0_38] : memref<8x2x32xf32, #tpu.memory_space<vmem>>, vector<1x2x32xf32>
    %81 = vector.shape_cast %80 : vector<1x2x32xf32> to vector<2x32xf32>
    %82 = arith.truncf %74 : vector<2x32xf32> to vector<2x32xbf16>
    %cst_39 = arith.constant dense<0.000000e+00> : vector<2x32xf32>
    %83 = tpu.matmul %82, %0, %cst_39 {dimension_numbers = #tpu.dot_dimension_numbers<[1], [0], [0], [1], [0, 0, 1, 1], [], []>} : vector<2x32xbf16>, vector<32x32xbf16>, vector<2x32xf32> -> vector<2x32xf32>
    %84 = arith.addf %81, %83 : vector<2x32xf32>
    %85 = math.tanh %84 : vector<2x32xf32>
    %86 = arith.index_cast %c7_i32 : i32 to index
    %c0_40 = arith.constant 0 : index
    %c0_41 = arith.constant 0 : index
    %87 = vector.load %arg4[%86, %c0_40, %c0_41] : memref<8x2x32xf32, #tpu.memory_space<vmem>>, vector<1x2x32xf32>
    %88 = vector.shape_cast %87 : vector<1x2x32xf32> to vector<2x32xf32>
    %89 = vector.shape_cast %85 : vector<2x32xf32> to vector<1x2x32xf32>
    tpu.vector_store %arg4[%86, %c0_40, %c0_41], %89 {strides = array<i32>} : memref<8x2x32xf32, #tpu.memory_space<vmem>>, vector<1x2x32xf32>,
    %c8_i32 = arith.constant 8 : i32
    %c0_42 = arith.constant 0 : index
    %c0_43 = arith.constant 0 : index
    %90 = vector.load %arg5[%c0_42, %c0_43] : memref<2x32xf32, #tpu.memory_space<vmem>>, vector<2x32xf32>
    tpu.vector_store %arg5[%c0_42, %c0_43], %85 {strides = array<i32>} : memref<2x32xf32, #tpu.memory_space<vmem>>, vector<2x32xf32>,
    return
  }
  func.func @transform_0(%arg0: i32) -> (i32, i32, i32) {
    %c0_i32 = arith.constant 0 : i32
    %c0_i32_0 = arith.constant 0 : i32
    %c0_i32_1 = arith.constant 0 : i32
    return %c0_i32, %arg0, %c0_i32_0 : i32, i32, i32
  }
  func.func @transform_1(%arg0: i32) -> (i32, i32) {
    %c0_i32 = arith.constant 0 : i32
    %c0_i32_0 = arith.constant 0 : i32
    return %arg0, %c0_i32 : i32, i32
  }
  func.func @transform_2(%arg0: i32) -> (i32, i32) {
    %c0_i32 = arith.constant 0 : i32
    %c0_i32_0 = arith.constant 0 : i32
    %c0_i32_1 = arith.constant 0 : i32
    return %c0_i32, %c0_i32_0 : i32, i32
  }
  func.func @transform_3(%arg0: i32) -> (i32, i32, i32) {
    %c0_i32 = arith.constant 0 : i32
    %c0_i32_0 = arith.constant 0 : i32
    %c0_i32_1 = arith.constant 0 : i32
    return %c0_i32, %arg0, %c0_i32_0 : i32, i32, i32
  }
  func.func @transform_4(%arg0: i32) -> (i32, i32) {
    %c0_i32 = arith.constant 0 : i32
    %c0_i32_0 = arith.constant 0 : i32
    return %arg0, %c0_i32 : i32, i32
  }
}

</mosaic_0001>

<llo_original>
// kernel: tpu_custom_call.1
$region0: #{tpu_custom_call.1}
  #allocation0 [shape = 'u32[]', space=smem, size = 0x4, offset = 0x4, fixed_abs, tag = 'smem constant byte address 0x4 - core index']
  #allocation1 [shape = 'u32[144,128]{1,0:T(1,128)}', space=vmem, size = 0x12000, scoped, tag = 'internal scratch']
  %s0 = inlined_call_operand.hbm [shape: f32[8,2,32], index: 0, kind: input, shape index: {}]
  %s1 = inlined_call_operand.vmem [shape: f32[2,32], index: 1, kind: input, shape index: {}]
  %s2 = inlined_call_operand.hbm [shape: bf16[32,32], index: 2, kind: input, shape index: {}]
  %s3 = inlined_call_operand.hbm [shape: f32[8,2,32], index: 3, kind: output, shape index: {0}]
  %s4 = inlined_call_operand.hbm [shape: f32[2,32], index: 4, kind: output, shape index: {1}]
  %5 = xla_tuple %s3, %s4
  %s6 = sld [smem:[#allocation0]]
  $region38: #{tpu_custom_call.1} parent=0
    _
  %s8 = ssub.s32 1, %s6
  %s9 = scalar_select 0, %s8, %s6
  $region1: #{tpu_custom_call.1} parent=0
    #allocation2 [shape = 'u8[8192]{0}', space=vmem, size = 0x2000, scoped, tag = 'input window, operand 0, single buffered']
    #allocation3 [shape = 's32[1]{0}', space=sflag, size = 0x4, scoped, tag = 'scoped memory for tpu_custom_call.1']
    #allocation4 [shape = 's32[1]{0}', space=sflag, size = 0x4, scoped, tag = 'scoped memory for tpu_custom_call.1']
    #allocation5 [shape = 'u8[8192]{0}', space=vmem, size = 0x2000, scoped, tag = 'input window, operand 2, single buffered']
    #allocation6 [shape = 's32[1]{0}', space=sflag, size = 0x4, scoped, tag = 'scoped memory for tpu_custom_call.1']
    #allocation7 [shape = 'u8[8192]{0}', space=vmem, size = 0x2000, scoped, tag = 'output window, operand 0, single buffered']
    #allocation8 [shape = 'u8[1024]{0}', space=vmem, size = 0x400, scoped, tag = 'output window, operand 1, single buffered']
    #allocation9 [shape = 's32[1]{0}', space=sflag, size = 0x4, scoped, tag = 'scoped memory for tpu_custom_call.1']
    %10 = vsyncpa [#allocation3], 0
    %11 = vsyncpa [#allocation6], 0
    %12 = vsyncpa [#allocation4], 0
    %13 = vsyncpa [#allocation9], 0
    // Predicated region
    $region2: #{tpu_custom_call.1} parent=1 // pred_check
      _
    $region3: #{tpu_custom_call.1} parent=1 // pred_check_branch
      %15 = sbr.rel (0) target = $region5
    $region4: #{tpu_custom_call.1} parent=1 // pred_region
      %s17 = ssub.s32 256, 256
      %18 = vsyncadd [#allocation3], %s17
      %s19 = sshll.u32 [#allocation2], 4
      %s20 = int_to_ptr.vmem [resolvable:$true] %s19
      %25 = dma.hbm_to_vmem [thread:$0]  %s0, 256, %s20, [#allocation3], 32, 32, 2
    $region5: #{tpu_custom_call.1} parent=1 // pred_fallthru
      _
    // Predicated region
    $region6: #{tpu_custom_call.1} parent=1 // pred_check
      _
    $region7: #{tpu_custom_call.1} parent=1 // pred_check_branch
      %27 = sbr.rel (0) target = $region9
    $region8: #{tpu_custom_call.1} parent=1 // pred_region
      _
    $region9: #{tpu_custom_call.1} parent=1 // pred_fallthru
      _
    // Predicated region
    $region10: #{tpu_custom_call.1} parent=1 // pred_check
      _
    $region11: #{tpu_custom_call.1} parent=1 // pred_check_branch
      %29 = sbr.rel (0) target = $region13
    $region12: #{tpu_custom_call.1} parent=1 // pred_region
      %s31 = ssub.s32 256, 256
      %32 = vsyncadd [#allocation6], %s31
      %s33 = sshll.u32 [#allocation5], 4
      %s34 = int_to_ptr.vmem [resolvable:$true] %s33
      %39 = dma.hbm_to_vmem [thread:$0]  %s2, 256, %s34, [#allocation6], 64, 64, 4
    $region13: #{tpu_custom_call.1} parent=1 // pred_fallthru
      _
    // Predicated region
    $region14: #{tpu_custom_call.1} parent=1 // pred_check
      _
    $region15: #{tpu_custom_call.1} parent=1 // pred_check_branch
      %41 = sbr.rel (0) target = $region17
    $region16: #{tpu_custom_call.1} parent=1 // pred_region
      %42 = dma.done [#allocation3], 256
    $region17: #{tpu_custom_call.1} parent=1 // pred_fallthru
      _
    // Predicated region
    $region18: #{tpu_custom_call.1} parent=1 // pred_check
      _
    $region19: #{tpu_custom_call.1} parent=1 // pred_check_branch
      %44 = sbr.rel (0) target = $region21
    $region20: #{tpu_custom_call.1} parent=1 // pred_region
      %45 = dma.done [#allocation6], 256
    $region21: #{tpu_custom_call.1} parent=1 // pred_fallthru
      _
    %v47 = vld [vmem:[#allocation5] sm:$0xf]
    %v48 = vld [vmem:[#allocation5 + $0x4] sm:$0xf]
    %v49 = vld [vmem:[#allocation5 + $0x8] sm:$0xf]
    %v50 = vld [vmem:[#allocation5 + $0xc] sm:$0xf]
    %v51 = vld [vmem:[%s1] sm:$0x3]
    %v52 = vld [vmem:[#allocation2] sm:$0x3]
    %v53 = vpack.c.bf16 %v51, %v51
    %v58 = vunpack.c.l.b16 %v47
    %v59 = vunpack.c.l.b16 %v48
    %v60 = vunpack.c.l.b16 %v49
    %v61 = vunpack.c.l.b16 %v50
    %v62 = vpack.c.b16 %v59, %v58
    %v63 = vpack.c.b16 %v61, %v60
    %vm66 = vcmask 261120
    %v68 = vsel %vm66, %v53, 0
    %70 = vmatprep.subr.bf16.mxu0 0
    %71 = vmatpush1.bf16.msra.mxu0 %v62
    %72 = vmatprep.subr.bf16.mxu0 0
    %73 = vmatpush1.bf16.msra.mxu0 %v63
    %74 = vmatprep.subr.bf16.mxu0 0
    %75 = vmatpush1.bf16.msra.mxu0 0
    %76 = vmatprep.subr.bf16.mxu0 0
    %77 = vmatpush1.bf16.msra.mxu0 0
    %78 = vmatprep.subr.bf16.mxu0 0
    %79 = vmatpush1.bf16.msra.mxu0 0
    %80 = vmatprep.subr.bf16.mxu0 0
    %81 = vmatpush1.bf16.msra.mxu0 0
    %82 = vmatprep.subr.bf16.mxu0 0
    %83 = vmatpush1.bf16.msra.mxu0 0
    %84 = vmatprep.subr.bf16.mxu0 0
    %85 = vmatpush1.bf16.msra.mxu0 0
    %86 = vmatprep.subr.bf16.mxu0 0
    %87 = vmatpush1.bf16.msra.mxu0 0
    %88 = vmatprep.subr.bf16.mxu0 0
    %89 = vmatpush1.bf16.msra.mxu0 0
    %90 = vmatprep.subr.bf16.mxu0 0
    %91 = vmatpush1.bf16.msra.mxu0 0
    %92 = vmatprep.subr.bf16.mxu0 0
    %93 = vmatpush1.bf16.msra.mxu0 0
    %94 = vmatprep.subr.bf16.mxu0 0
    %95 = vmatpush1.bf16.msra.mxu0 0
    %96 = vmatprep.subr.bf16.mxu0 0
    %97 = vmatpush1.bf16.msra.mxu0 0
    %98 = vmatprep.subr.bf16.mxu0 0
    %99 = vmatpush1.bf16.msra.mxu0 0
    %100 = vmatprep.subr.bf16.mxu0 0
    %101 = vmatpush1.bf16.msra.mxu0 0
    %102 = vmatprep.mubr.bf16.mxu0 0
    %103 = vmatmul.mubr.bf16.gmra.mrb[0].mxu0 %v68
    %v104 = vpop.f32.mrb[0].mxu0
    %v105 = vadd.f32 0.0, %v104
    %v106 = vpop.f32.mrb[0].mxu0
    %v107 = vpop.f32.mrb[0].mxu0
    %v108 = vpop.f32.mrb[0].mxu0
    %109 = vdwg.mxu0
    %v110 = vadd.f32 %v52, %v105
    %v111 = vtanh.pop %v110
    %vm112 = vcmask 254976
    %113 = vst.msk [vmem:[#allocation7] sm:$0x3] %vm112, %v111
    %s114 = scalar_lea.vmem [#allocation2], 2
    %v115 = vld [vmem:[%s114] sm:$0x3]
    %v116 = vpack.c.bf16 %v111, %v111
    %v118 = vsel %vm66, %v116, 0
    %120 = vmatprep.subr.bf16.mxu0 0
    %121 = vmatpush1.bf16.msra.mxu0 %v62
    %122 = vmatprep.subr.bf16.mxu0 0
    %123 = vmatpush1.bf16.msra.mxu0 %v63
    %124 = vmatprep.subr.bf16.mxu0 0
    %125 = vmatpush1.bf16.msra.mxu0 0
    %126 = vmatprep.subr.bf16.mxu0 0
    %127 = vmatpush1.bf16.msra.mxu0 0
    %128 = vmatprep.subr.bf16.mxu0 0
    %129 = vmatpush1.bf16.msra.mxu0 0
    %130 = vmatprep.subr.bf16.mxu0 0
    %131 = vmatpush1.bf16.msra.mxu0 0
    %132 = vmatprep.subr.bf16.mxu0 0
    %133 = vmatpush1.bf16.msra.mxu0 0
    %134 = vmatprep.subr.bf16.mxu0 0
    %135 = vmatpush1.bf16.msra.mxu0 0
    %136 = vmatprep.subr.bf16.mxu0 0
    %137 = vmatpush1.bf16.msra.mxu0 0
    %138 = vmatprep.subr.bf16.mxu0 0
    %139 = vmatpush1.bf16.msra.mxu0 0
    %140 = vmatprep.subr.bf16.mxu0 0
    %141 = vmatpush1.bf16.msra.mxu0 0
    %142 = vmatprep.subr.bf16.mxu0 0
    %143 = vmatpush1.bf16.msra.mxu0 0
    %144 = vmatprep.subr.bf16.mxu0 0
    %145 = vmatpush1.bf16.msra.mxu0 0
    %146 = vmatprep.subr.bf16.mxu0 0
    %147 = vmatpush1.bf16.msra.mxu0 0
    %148 = vmatprep.subr.bf16.mxu0 0
    %149 = vmatpush1.bf16.msra.mxu0 0
    %150 = vmatprep.subr.bf16.mxu0 0
    %151 = vmatpush1.bf16.msra.mxu0 0
    %152 = vmatprep.mubr.bf16.mxu0 0
    %153 = vmatmul.mubr.bf16.gmra.mrb[0].mxu0 %v118
    %v154 = vpop.f32.mrb[0].mxu0
    %v155 = vadd.f32 0.0, %v154
    %v156 = vpop.f32.mrb[0].mxu0
    %v157 = vpop.f32.mrb[0].mxu0
    %v158 = vpop.f32.mrb[0].mxu0
    %159 = vdwg.mxu0
    %v160 = vadd.f32 %v115, %v155
    %v161 = vtanh.pop %v160
    %s162 = scalar_lea.vmem [#allocation7], 2
    %163 = vst.msk [vmem:[%s162] sm:$0x3] %vm112, %v161
    %s164 = scalar_lea.vmem [#allocation2], 4
    %v165 = vld [vmem:[%s164] sm:$0x3]
    %v166 = vpack.c.bf16 %v161, %v161
    %v168 = vsel %vm66, %v166, 0
    %170 = vmatprep.subr.bf16.mxu0 0
    %171 = vmatpush1.bf16.msra.mxu0 %v62
    %172 = vmatprep.subr.bf16.mxu0 0
    %173 = vmatpush1.bf16.msra.mxu0 %v63
    %174 = vmatprep.subr.bf16.mxu0 0
    %175 = vmatpush1.bf16.msra.mxu0 0
    %176 = vmatprep.subr.bf16.mxu0 0
    %177 = vmatpush1.bf16.msra.mxu0 0
    %178 = vmatprep.subr.bf16.mxu0 0
    %179 = vmatpush1.bf16.msra.mxu0 0
    %180 = vmatprep.subr.bf16.mxu0 0
    %181 = vmatpush1.bf16.msra.mxu0 0
    %182 = vmatprep.subr.bf16.mxu0 0
    %183 = vmatpush1.bf16.msra.mxu0 0
    %184 = vmatprep.subr.bf16.mxu0 0
    %185 = vmatpush1.bf16.msra.mxu0 0
    %186 = vmatprep.subr.bf16.mxu0 0
    %187 = vmatpush1.bf16.msra.mxu0 0
    %188 = vmatprep.subr.bf16.mxu0 0
    %189 = vmatpush1.bf16.msra.mxu0 0
    %190 = vmatprep.subr.bf16.mxu0 0
    %191 = vmatpush1.bf16.msra.mxu0 0
    %192 = vmatprep.subr.bf16.mxu0 0
    %193 = vmatpush1.bf16.msra.mxu0 0
    %194 = vmatprep.subr.bf16.mxu0 0
    %195 = vmatpush1.bf16.msra.mxu0 0
    %196 = vmatprep.subr.bf16.mxu0 0
    %197 = vmatpush1.bf16.msra.mxu0 0
    %198 = vmatprep.subr.bf16.mxu0 0
    %199 = vmatpush1.bf16.msra.mxu0 0
    %200 = vmatprep.subr.bf16.mxu0 0
    %201 = vmatpush1.bf16.msra.mxu0 0
    %202 = vmatprep.mubr.bf16.mxu0 0
    %203 = vmatmul.mubr.bf16.gmra.mrb[0].mxu0 %v168
    %v204 = vpop.f32.mrb[0].mxu0
    %v205 = vadd.f32 0.0, %v204
    %v206 = vpop.f32.mrb[0].mxu0
    %v207 = vpop.f32.mrb[0].mxu0
    %v208 = vpop.f32.mrb[0].mxu0
    %209 = vdwg.mxu0
    %v210 = vadd.f32 %v165, %v205
    %v211 = vtanh.pop %v210
    %s212 = scalar_lea.vmem [#allocation7], 4
    %213 = vst.msk [vmem:[%s212] sm:$0x3] %vm112, %v211
    %s214 = scalar_lea.vmem [#allocation2], 6
    %v215 = vld [vmem:[%s214] sm:$0x3]
    %v216 = vpack.c.bf16 %v211, %v211
    %v218 = vsel %vm66, %v216, 0
    %220 = vmatprep.subr.bf16.mxu0 0
    %221 = vmatpush1.bf16.msra.mxu0 %v62
    %222 = vmatprep.subr.bf16.mxu0 0
    %223 = vmatpush1.bf16.msra.mxu0 %v63
    %224 = vmatprep.subr.bf16.mxu0 0
    %225 = vmatpush1.bf16.msra.mxu0 0
    %226 = vmatprep.subr.bf16.mxu0 0
    %227 = vmatpush1.bf16.msra.mxu0 0
    %228 = vmatprep.subr.bf16.mxu0 0
    %229 = vmatpush1.bf16.msra.mxu0 0
    %230 = vmatprep.subr.bf16.mxu0 0
    %231 = vmatpush1.bf16.msra.mxu0 0
    %232 = vmatprep.subr.bf16.mxu0 0
    %233 = vmatpush1.bf16.msra.mxu0 0
    %234 = vmatprep.subr.bf16.mxu0 0
    %235 = vmatpush1.bf16.msra.mxu0 0
    %236 = vmatprep.subr.bf16.mxu0 0
    %237 = vmatpush1.bf16.msra.mxu0 0
    %238 = vmatprep.subr.bf16.mxu0 0
    %239 = vmatpush1.bf16.msra.mxu0 0
    %240 = vmatprep.subr.bf16.mxu0 0
    %241 = vmatpush1.bf16.msra.mxu0 0
    %242 = vmatprep.subr.bf16.mxu0 0
    %243 = vmatpush1.bf16.msra.mxu0 0
    %244 = vmatprep.subr.bf16.mxu0 0
    %245 = vmatpush1.bf16.msra.mxu0 0
    %246 = vmatprep.subr.bf16.mxu0 0
    %247 = vmatpush1.bf16.msra.mxu0 0
    %248 = vmatprep.subr.bf16.mxu0 0
    %249 = vmatpush1.bf16.msra.mxu0 0
    %250 = vmatprep.subr.bf16.mxu0 0
    %251 = vmatpush1.bf16.msra.mxu0 0
    %252 = vmatprep.mubr.bf16.mxu0 0
    %253 = vmatmul.mubr.bf16.gmra.mrb[0].mxu0 %v218
    %v254 = vpop.f32.mrb[0].mxu0
    %v255 = vadd.f32 0.0, %v254
    %v256 = vpop.f32.mrb[0].mxu0
    %v257 = vpop.f32.mrb[0].mxu0
    %v258 = vpop.f32.mrb[0].mxu0
    %259 = vdwg.mxu0
    %v260 = vadd.f32 %v215, %v255
    %v261 = vtanh.pop %v260
    %s262 = scalar_lea.vmem [#allocation7], 6
    %263 = vst.msk [vmem:[%s262] sm:$0x3] %vm112, %v261
    %s264 = scalar_lea.vmem [#allocation2], 8
    %v265 = vld [vmem:[%s264] sm:$0x3]
    %v266 = vpack.c.bf16 %v261, %v261
    %v268 = vsel %vm66, %v266, 0
    %270 = vmatprep.subr.bf16.mxu0 0
    %271 = vmatpush1.bf16.msra.mxu0 %v62
    %272 = vmatprep.subr.bf16.mxu0 0
    %273 = vmatpush1.bf16.msra.mxu0 %v63
    %274 = vmatprep.subr.bf16.mxu0 0
    %275 = vmatpush1.bf16.msra.mxu0 0
    %276 = vmatprep.subr.bf16.mxu0 0
    %277 = vmatpush1.bf16.msra.mxu0 0
    %278 = vmatprep.subr.bf16.mxu0 0
    %279 = vmatpush1.bf16.msra.mxu0 0
    %280 = vmatprep.subr.bf16.mxu0 0
    %281 = vmatpush1.bf16.msra.mxu0 0
    %282 = vmatprep.subr.bf16.mxu0 0
    %283 = vmatpush1.bf16.msra.mxu0 0
    %284 = vmatprep.subr.bf16.mxu0 0
    %285 = vmatpush1.bf16.msra.mxu0 0
    %286 = vmatprep.subr.bf16.mxu0 0
    %287 = vmatpush1.bf16.msra.mxu0 0
    %288 = vmatprep.subr.bf16.mxu0 0
    %289 = vmatpush1.bf16.msra.mxu0 0
    %290 = vmatprep.subr.bf16.mxu0 0
    %291 = vmatpush1.bf16.msra.mxu0 0
    %292 = vmatprep.subr.bf16.mxu0 0
    %293 = vmatpush1.bf16.msra.mxu0 0
    %294 = vmatprep.subr.bf16.mxu0 0
    %295 = vmatpush1.bf16.msra.mxu0 0
    %296 = vmatprep.subr.bf16.mxu0 0
    %297 = vmatpush1.bf16.msra.mxu0 0
    %298 = vmatprep.subr.bf16.mxu0 0
    %299 = vmatpush1.bf16.msra.mxu0 0
    %300 = vmatprep.subr.bf16.mxu0 0
    %301 = vmatpush1.bf16.msra.mxu0 0
    %302 = vmatprep.mubr.bf16.mxu0 0
    %303 = vmatmul.mubr.bf16.gmra.mrb[0].mxu0 %v268
    %v304 = vpop.f32.mrb[0].mxu0
    %v305 = vadd.f32 0.0, %v304
    %v306 = vpop.f32.mrb[0].mxu0
    %v307 = vpop.f32.mrb[0].mxu0
    %v308 = vpop.f32.mrb[0].mxu0
    %309 = vdwg.mxu0
    %v310 = vadd.f32 %v265, %v305
    %v311 = vtanh.pop %v310
    %s312 = scalar_lea.vmem [#allocation7], 8
    %313 = vst.msk [vmem:[%s312] sm:$0x3] %vm112, %v311
    %s314 = scalar_lea.vmem [#allocation2], 10
    %v315 = vld [vmem:[%s314] sm:$0x3]
    %v316 = vpack.c.bf16 %v311, %v311
    %v318 = vsel %vm66, %v316, 0
    %320 = vmatprep.subr.bf16.mxu0 0
    %321 = vmatpush1.bf16.msra.mxu0 %v62
    %322 = vmatprep.subr.bf16.mxu0 0
    %323 = vmatpush1.bf16.msra.mxu0 %v63
    %324 = vmatprep.subr.bf16.mxu0 0
    %325 = vmatpush1.bf16.msra.mxu0 0
    %326 = vmatprep.subr.bf16.mxu0 0
    %327 = vmatpush1.bf16.msra.mxu0 0
    %328 = vmatprep.subr.bf16.mxu0 0
    %329 = vmatpush1.bf16.msra.mxu0 0
    %330 = vmatprep.subr.bf16.mxu0 0
    %331 = vmatpush1.bf16.msra.mxu0 0
    %332 = vmatprep.subr.bf16.mxu0 0
    %333 = vmatpush1.bf16.msra.mxu0 0
    %334 = vmatprep.subr.bf16.mxu0 0
    %335 = vmatpush1.bf16.msra.mxu0 0
    %336 = vmatprep.subr.bf16.mxu0 0
    %337 = vmatpush1.bf16.msra.mxu0 0
    %338 = vmatprep.subr.bf16.mxu0 0
    %339 = vmatpush1.bf16.msra.mxu0 0
    %340 = vmatprep.subr.bf16.mxu0 0
    %341 = vmatpush1.bf16.msra.mxu0 0
    %342 = vmatprep.subr.bf16.mxu0 0
    %343 = vmatpush1.bf16.msra.mxu0 0
    %344 = vmatprep.subr.bf16.mxu0 0
    %345 = vmatpush1.bf16.msra.mxu0 0
    %346 = vmatprep.subr.bf16.mxu0 0
    %347 = vmatpush1.bf16.msra.mxu0 0
    %348 = vmatprep.subr.bf16.mxu0 0
    %349 = vmatpush1.bf16.msra.mxu0 0
    %350 = vmatprep.subr.bf16.mxu0 0
    %351 = vmatpush1.bf16.msra.mxu0 0
    %352 = vmatprep.mubr.bf16.mxu0 0
    %353 = vmatmul.mubr.bf16.gmra.mrb[0].mxu0 %v318
    %v354 = vpop.f32.mrb[0].mxu0
    %v355 = vadd.f32 0.0, %v354
    %v356 = vpop.f32.mrb[0].mxu0
    %v357 = vpop.f32.mrb[0].mxu0
    %v358 = vpop.f32.mrb[0].mxu0
    %359 = vdwg.mxu0
    %v360 = vadd.f32 %v315, %v355
    %v361 = vtanh.pop %v360
    %s362 = scalar_lea.vmem [#allocation7], 10
    %363 = vst.msk [vmem:[%s362] sm:$0x3] %vm112, %v361
    %s364 = scalar_lea.vmem [#allocation2], 12
    %v365 = vld [vmem:[%s364] sm:$0x3]
    %v366 = vpack.c.bf16 %v361, %v361
    %v368 = vsel %vm66, %v366, 0
    %370 = vmatprep.subr.bf16.mxu0 0
    %371 = vmatpush1.bf16.msra.mxu0 %v62
    %372 = vmatprep.subr.bf16.mxu0 0
    %373 = vmatpush1.bf16.msra.mxu0 %v63
    %374 = vmatprep.subr.bf16.mxu0 0
    %375 = vmatpush1.bf16.msra.mxu0 0
    %376 = vmatprep.subr.bf16.mxu0 0
    %377 = vmatpush1.bf16.msra.mxu0 0
    %378 = vmatprep.subr.bf16.mxu0 0
    %379 = vmatpush1.bf16.msra.mxu0 0
    %380 = vmatprep.subr.bf16.mxu0 0
    %381 = vmatpush1.bf16.msra.mxu0 0
    %382 = vmatprep.subr.bf16.mxu0 0
    %383 = vmatpush1.bf16.msra.mxu0 0
    %384 = vmatprep.subr.bf16.mxu0 0
    %385 = vmatpush1.bf16.msra.mxu0 0
    %386 = vmatprep.subr.bf16.mxu0 0
    %387 = vmatpush1.bf16.msra.mxu0 0
    %388 = vmatprep.subr.bf16.mxu0 0
    %389 = vmatpush1.bf16.msra.mxu0 0
    %390 = vmatprep.subr.bf16.mxu0 0
    %391 = vmatpush1.bf16.msra.mxu0 0
    %392 = vmatprep.subr.bf16.mxu0 0
    %393 = vmatpush1.bf16.msra.mxu0 0
    %394 = vmatprep.subr.bf16.mxu0 0
    %395 = vmatpush1.bf16.msra.mxu0 0
    %396 = vmatprep.subr.bf16.mxu0 0
    %397 = vmatpush1.bf16.msra.mxu0 0
    %398 = vmatprep.subr.bf16.mxu0 0
    %399 = vmatpush1.bf16.msra.mxu0 0
    %400 = vmatprep.subr.bf16.mxu0 0
    %401 = vmatpush1.bf16.msra.mxu0 0
    %402 = vmatprep.mubr.bf16.mxu0 0
    %403 = vmatmul.mubr.bf16.gmra.mrb[0].mxu0 %v368
    %v404 = vpop.f32.mrb[0].mxu0
    %v405 = vadd.f32 0.0, %v404
    %v406 = vpop.f32.mrb[0].mxu0
    %v407 = vpop.f32.mrb[0].mxu0
    %v408 = vpop.f32.mrb[0].mxu0
    %409 = vdwg.mxu0
    %v410 = vadd.f32 %v365, %v405
    %v411 = vtanh.pop %v410
    %s412 = scalar_lea.vmem [#allocation7], 12
    %413 = vst.msk [vmem:[%s412] sm:$0x3] %vm112, %v411
    %s414 = scalar_lea.vmem [#allocation2], 14
    %v415 = vld [vmem:[%s414] sm:$0x3]
    %v416 = vpack.c.bf16 %v411, %v411
    %v418 = vsel %vm66, %v416, 0
    %420 = vmatprep.subr.bf16.mxu0 0
    %421 = vmatpush1.bf16.msra.mxu0 %v62
    %422 = vmatprep.subr.bf16.mxu0 0
    %423 = vmatpush1.bf16.msra.mxu0 %v63
    %424 = vmatprep.subr.bf16.mxu0 0
    %425 = vmatpush1.bf16.msra.mxu0 0
    %426 = vmatprep.subr.bf16.mxu0 0
    %427 = vmatpush1.bf16.msra.mxu0 0
    %428 = vmatprep.subr.bf16.mxu0 0
    %429 = vmatpush1.bf16.msra.mxu0 0
    %430 = vmatprep.subr.bf16.mxu0 0
    %431 = vmatpush1.bf16.msra.mxu0 0
    %432 = vmatprep.subr.bf16.mxu0 0
    %433 = vmatpush1.bf16.msra.mxu0 0
    %434 = vmatprep.subr.bf16.mxu0 0
    %435 = vmatpush1.bf16.msra.mxu0 0
    %436 = vmatprep.subr.bf16.mxu0 0
    %437 = vmatpush1.bf16.msra.mxu0 0
    %438 = vmatprep.subr.bf16.mxu0 0
    %439 = vmatpush1.bf16.msra.mxu0 0
    %440 = vmatprep.subr.bf16.mxu0 0
    %441 = vmatpush1.bf16.msra.mxu0 0
    %442 = vmatprep.subr.bf16.mxu0 0
    %443 = vmatpush1.bf16.msra.mxu0 0
    %444 = vmatprep.subr.bf16.mxu0 0
    %445 = vmatpush1.bf16.msra.mxu0 0
    %446 = vmatprep.subr.bf16.mxu0 0
    %447 = vmatpush1.bf16.msra.mxu0 0
    %448 = vmatprep.subr.bf16.mxu0 0
    %449 = vmatpush1.bf16.msra.mxu0 0
    %450 = vmatprep.subr.bf16.mxu0 0
    %451 = vmatpush1.bf16.msra.mxu0 0
    %452 = vmatprep.mubr.bf16.mxu0 0
    %453 = vmatmul.mubr.bf16.gmra.mrb[0].mxu0 %v418
    %v454 = vpop.f32.mrb[0].mxu0
    %v455 = vadd.f32 0.0, %v454
    %v456 = vpop.f32.mrb[0].mxu0
    %v457 = vpop.f32.mrb[0].mxu0
    %v458 = vpop.f32.mrb[0].mxu0
    %459 = vdwg.mxu0
    %v460 = vadd.f32 %v415, %v455
    %v461 = vtanh.pop %v460
    %s462 = scalar_lea.vmem [#allocation7], 14
    %463 = vst.msk [vmem:[%s462] sm:$0x3] %vm112, %v461
    %464 = vst.msk [vmem:[#allocation8] sm:$0x3] %vm112, %v461
    // Predicated region
    $region22: #{tpu_custom_call.1} parent=1 // pred_check
      _
    $region23: #{tpu_custom_call.1} parent=1 // pred_check_branch
      %466 = sbr.rel (0) target = $region25
    $region24: #{tpu_custom_call.1} parent=1 // pred_region
      %s468 = ssub.s32 256, 256
      %469 = vsyncadd [#allocation4], %s468
      %s470 = sshll.u32 [#allocation7], 4
      %s471 = int_to_ptr.vmem [resolvable:$true] %s470
      %476 = dma.vmem_to_hbm [thread:$0]  %s471, 256, %s3, [#allocation4], 32, 32, 2
    $region25: #{tpu_custom_call.1} parent=1 // pred_fallthru
      _
    // Predicated region
    $region26: #{tpu_custom_call.1} parent=1 // pred_check
      _
    $region27: #{tpu_custom_call.1} parent=1 // pred_check_branch
      %478 = sbr.rel (0) target = $region29
    $region28: #{tpu_custom_call.1} parent=1 // pred_region
      %s480 = ssub.s32 32, 32
      %481 = vsyncadd [#allocation9], %s480
      %s483 = sshll.u32 [#allocation8], 4
      %s484 = int_to_ptr.vmem [resolvable:$true] %s483
      %486 = dma.vmem_to_hbm [thread:$0]  %s484, 32, %s4, [#allocation9]
    $region29: #{tpu_custom_call.1} parent=1 // pred_fallthru
      _
    // Predicated region
    $region30: #{tpu_custom_call.1} parent=1 // pred_check
      _
    $region31: #{tpu_custom_call.1} parent=1 // pred_check_branch
      %488 = sbr.rel (0) target = $region33
    $region32: #{tpu_custom_call.1} parent=1 // pred_region
      %489 = dma.done [#allocation4], 256
    $region33: #{tpu_custom_call.1} parent=1 // pred_fallthru
      _
    // Predicated region
    $region34: #{tpu_custom_call.1} parent=1 // pred_check
      _
    $region35: #{tpu_custom_call.1} parent=1 // pred_check_branch
      %491 = sbr.rel (0) target = $region37
    $region36: #{tpu_custom_call.1} parent=1 // pred_region
      %492 = dma.done [#allocation9], 32
    $region37: #{tpu_custom_call.1} parent=1 // pred_fallthru
      _
    %493 = vsyncpa [#allocation3], 1
    %494 = vsyncpa [#allocation6], 1
    %495 = vsyncpa [#allocation4], 1
    %496 = vsyncpa [#allocation9], 1

</llo_original>
